<compile_context>
chip_gen: v5e
topology: v5e:2x2
jax: 0.10.0
libtpu: 0.0.40
codegen_flags: <defaults>
</compile_context>

<pallas_src>
import jax
import jax.numpy as jnp
import numpy as np
from jax.experimental import pallas as pl
from jax.experimental.pallas import tpu as pltpu


_LANE = 128      # last block dim must be a multiple of 128 (lane width)
_SUBLANE = 8     # second-to-last block dim must be a multiple of 8 (sublane width)


def _round_up(n, m):
    return ((n + m - 1) // m) * m


def _residual_kernel(x_ref, w_ref, scale_ref, shift_ref, o_ref):
    # x_ref:     (TB, I_pad)    bf16, batch tile for this grid step
    # w_ref:     (I_pad, O_pad) bf16, resident across all grid steps
    # scale_ref: (1, O_pad)     f32,  gamma / sqrt(var + eps)
    # shift_ref: (1, O_pad)     f32,  (bias - mean) * scale + beta
    h = jnp.dot(x_ref[...], w_ref[...], preferred_element_type=jnp.float32)
    o_ref[...] = jnp.maximum(h * scale_ref[...] + shift_ref[...], 0.0)


def residual_forward(x, w, b, gamma, beta, running_mean, running_var,
                     eps=1e-5, batch_tile=128):
    """Pallas forward of Residual: concat([relu(bn(x @ w + b)), x], axis=1).

    x: (B, I) f32.  w: (I, O) f32 (transposed vs. torch's (O, I) Linear weight).
    BatchNorm1d is applied in eval mode using the given running statistics.
    """
    B, I = x.shape
    O = w.shape[1]

    # ---- hardware-friendly padded shapes -----------------------------------
    I_pad = _round_up(I, _LANE)
    O_pad = _round_up(O, _LANE)
    B8 = _round_up(B, _SUBLANE)
    TB = min(batch_tile, B8)          # 128-row tiles for real batches, B8 for tiny demos
    B_pad = _round_up(B8, TB)

    x32 = x.astype(jnp.float32)
    x_p = jnp.pad(x32, ((0, B_pad - B), (0, I_pad - I))).astype(jnp.bfloat16)
    w_p = jnp.pad(w.astype(jnp.float32),
                  ((0, I_pad - I), (0, O_pad - O))).astype(jnp.bfloat16)

    # Fold Linear bias + eval-mode BatchNorm into a per-feature affine:
    #   bn(x @ w + b) = (x @ w) * scale + shift
    inv_std = jax.lax.rsqrt(running_var.astype(jnp.float32) + eps)
    scale = gamma.astype(jnp.float32) * inv_std
    shift = (b.astype(jnp.float32) - running_mean.astype(jnp.float32)) * scale \
            + beta.astype(jnp.float32)
    scale_p = jnp.pad(scale, (0, O_pad - O)).reshape(1, O_pad)
    shift_p = jnp.pad(shift, (0, O_pad - O)).reshape(1, O_pad)

    # VMEM budget (f32/bf16): resident weight I_pad*O_pad*2B + scale/shift
    # + 2x double-buffered (TB*I_pad*2B + TB*O_pad*4B) — tiny here, and well under
    # the 16/32 MiB default scoped limits even for CTGAN-sized layers.
    flops = 2 * B_pad * I_pad * O_pad
    bytes_accessed = (x_p.size * 2 + w_p.size * 2
                      + (scale_p.size + shift_p.size) * 4 + B_pad * O_pad * 4)

    y_pad = pl.pallas_call(
        _residual_kernel,
        out_shape=jax.ShapeDtypeStruct((B_pad, O_pad), jnp.float32),
        grid_spec=pltpu.PrefetchScalarGridSpec(
            num_scalar_prefetch=0,
            grid=(B_pad // TB,),
            in_specs=[
                pl.BlockSpec((TB, I_pad), lambda i: (i, 0)),      # batch-tiled input
                pl.BlockSpec((I_pad, O_pad), lambda i: (0, 0)),   # resident weight
                pl.BlockSpec((1, O_pad), lambda i: (0, 0)),       # resident scale
                pl.BlockSpec((1, O_pad), lambda i: (0, 0)),       # resident shift
            ],
            out_specs=pl.BlockSpec((TB, O_pad), lambda i: (i, 0)),
        ),
        compiler_params=pltpu.CompilerParams(
            dimension_semantics=("parallel",),   # shard batch over v7x's 2 TCs
        ),
        cost_estimate=pl.CostEstimate(
            flops=flops, transcendentals=0, bytes_accessed=bytes_accessed),
    )(x_p, w_p, scale_p, shift_p)

    out = y_pad[:B, :O]
    # Residual concat (module semantics): torch.cat([out, input_], dim=1)
    return jnp.concatenate([out, x32], axis=1)


def _reference(x, w, b, gamma, beta, mean, var, eps=1e-5):
    """Pure-JAX f32 reference of the same forward pass."""
    xf = x.astype(jnp.float32)
    z = xf @ w + b
    bn = gamma * (z - mean) * jax.lax.rsqrt(var + eps) + beta
    return jnp.concatenate([jnp.maximum(bn, 0.0), xf], axis=1)


if __name__ == "__main__":
    key = jax.random.PRNGKey(0)

    # Small shapes consistent with Residual(i, o): x is (B, i); here Residual(32, 64).
    B, I, O = 2, 32, 64
    kx, kw, kb, kg, kbe, km, kv = jax.random.split(key, 7)

    x = jax.random.normal(kx, (B, I), jnp.float32)

    # nn.Linear init: U(-1/sqrt(i), 1/sqrt(i)) for weight and bias.
    bound = 1.0 / np.sqrt(I)
    w = jax.random.uniform(kw, (I, O), jnp.float32, -bound, bound)
    b = jax.random.uniform(kb, (O,), jnp.float32, -bound, bound)

    # Non-trivial eval-mode BatchNorm statistics/affine so the fold is exercised.
    gamma = jax.random.uniform(kg, (O,), jnp.float32, 0.5, 1.5)
    beta = 0.1 * jax.random.normal(kbe, (O,), jnp.float32)
    running_mean = 0.5 * jax.random.normal(km, (O,), jnp.float32)
    running_var = jax.random.uniform(kv, (O,), jnp.float32, 0.5, 1.5)

    out = residual_forward(x, w, b, gamma, beta, running_mean, running_var)
    out = jax.block_until_ready(out)

    ref = _reference(x, w, b, gamma, beta, running_mean, running_var)
    # bf16 MXU operands (f32 accumulation) => relaxed tolerance vs. the f32 reference.
    np.testing.assert_allclose(np.asarray(out), np.asarray(ref), rtol=3e-2, atol=3e-2)
    assert out.shape == (B, O + I)

    print("KERNEL_OK")
</pallas_src>

<mosaic_0001>
module attributes {stable_mosaic.version = 11 : i64} {
  func.func @_residual_kernel(%arg0: i32, %arg1: memref<8x128xbf16, #tpu.memory_space<vmem>>, %arg2: memref<128x128xbf16, #tpu.memory_space<vmem>>, %arg3: memref<1x128xf32, #tpu.memory_space<vmem>>, %arg4: memref<1x128xf32, #tpu.memory_space<vmem>>, %arg5: memref<8x128xf32, #tpu.memory_space<vmem>>) attributes {dimension_semantics = [#tpu.dimension_semantics<parallel>], iteration_bounds = array<i64: 1>, scalar_prefetch = 0 : i64, scratch_operands = 0 : i64, tpu.core_type = #tpu.core_type<tc>, window_params = [{transform_indices = @transform_0, window_bounds = array<i64: 8, 128>}, {pipeline_mode = #tpu.pipeline_mode<synchronous>, transform_indices = @transform_1, window_bounds = array<i64: 128, 128>}, {pipeline_mode = #tpu.pipeline_mode<synchronous>, transform_indices = @transform_2, window_bounds = array<i64: 1, 128>}, {pipeline_mode = #tpu.pipeline_mode<synchronous>, transform_indices = @transform_3, window_bounds = array<i64: 1, 128>}, {transform_indices = @transform_4, window_bounds = array<i64: 8, 128>}]} {
    %c0 = arith.constant 0 : index
    %c0_0 = arith.constant 0 : index
    %0 = vector.load %arg1[%c0, %c0_0] : memref<8x128xbf16, #tpu.memory_space<vmem>>, vector<8x128xbf16>
    %c0_1 = arith.constant 0 : index
    %c0_2 = arith.constant 0 : index
    %1 = vector.load %arg2[%c0_1, %c0_2] : memref<128x128xbf16, #tpu.memory_space<vmem>>, vector<128x128xbf16>
    %cst = arith.constant dense<0.000000e+00> : vector<8x128xf32>
    %2 = tpu.matmul %0, %1, %cst {dimension_numbers = #tpu.dot_dimension_numbers<[1], [0], [0], [1], [0, 0, 1, 1], [], []>} : vector<8x128xbf16>, vector<128x128xbf16>, vector<8x128xf32> -> vector<8x128xf32>
    %c0_3 = arith.constant 0 : index
    %c0_4 = arith.constant 0 : index
    %3 = vector.load %arg3[%c0_3, %c0_4] : memref<1x128xf32, #tpu.memory_space<vmem>>, vector<1x128xf32>
    %4 = vector.broadcast %3 : vector<1x128xf32> to vector<8x128xf32>
    %5 = arith.mulf %2, %4 : vector<8x128xf32>
    %c0_5 = arith.constant 0 : index
    %c0_6 = arith.constant 0 : index
    %6 = vector.load %arg4[%c0_5, %c0_6] : memref<1x128xf32, #tpu.memory_space<vmem>>, vector<1x128xf32>
    %7 = vector.broadcast %6 : vector<1x128xf32> to vector<8x128xf32>
    %8 = arith.addf %5, %7 : vector<8x128xf32>
    %cst_7 = arith.constant 0.000000e+00 : f32
    %9 = vector.broadcast %cst_7 : f32 to vector<8x128xf32>
    %10 = arith.maximumf %8, %9 : vector<8x128xf32>
    %c0_8 = arith.constant 0 : index
    %c0_9 = arith.constant 0 : index
    %11 = vector.load %arg5[%c0_8, %c0_9] : memref<8x128xf32, #tpu.memory_space<vmem>>, vector<8x128xf32>
    tpu.vector_store %arg5[%c0_8, %c0_9], %10 {strides = array<i32>} : memref<8x128xf32, #tpu.memory_space<vmem>>, vector<8x128xf32>,
    return
  }
  func.func @transform_0(%arg0: i32) -> (i32, i32) {
    %c0_i32 = arith.constant 0 : i32
    %c0_i32_0 = arith.constant 0 : i32
    return %arg0, %c0_i32 : i32, i32
  }
  func.func @transform_1(%arg0: i32) -> (i32, i32) {
    %c0_i32 = arith.constant 0 : i32
    %c0_i32_0 = arith.constant 0 : i32
    %c0_i32_1 = arith.constant 0 : i32
    return %c0_i32, %c0_i32_0 : i32, i32
  }
  func.func @transform_2(%arg0: i32) -> (i32, i32) {
    %c0_i32 = arith.constant 0 : i32
    %c0_i32_0 = arith.constant 0 : i32
    %c0_i32_1 = arith.constant 0 : i32
    return %c0_i32, %c0_i32_0 : i32, i32
  }
  func.func @transform_3(%arg0: i32) -> (i32, i32) {
    %c0_i32 = arith.constant 0 : i32
    %c0_i32_0 = arith.constant 0 : i32
    %c0_i32_1 = arith.constant 0 : i32
    return %c0_i32, %c0_i32_0 : i32, i32
  }
  func.func @transform_4(%arg0: i32) -> (i32, i32) {
    %c0_i32 = arith.constant 0 : i32
    %c0_i32_0 = arith.constant 0 : i32
    return %arg0, %c0_i32 : i32, i32
  }
}

</mosaic_0001>

<llo_original>
// kernel: tpu_custom_call.1
$region0: #{tpu_custom_call.1}
  #allocation0 [shape = 'u32[]', space=smem, size = 0x4, offset = 0x4, fixed_abs, tag = 'smem constant byte address 0x4 - core index']
  #allocation1 [shape = 'u32[72,128]{1,0:T(1,128)}', space=vmem, size = 0x9000, scoped, tag = 'internal scratch']
  %s0 = inlined_call_operand.hbm [shape: bf16[8,128], index: 0, kind: input, shape index: {}]
  %s1 = inlined_call_operand.hbm [shape: bf16[128,128], index: 1, kind: input, shape index: {}]
  %s2 = inlined_call_operand.vmem [shape: f32[1,128], index: 2, kind: input, shape index: {}]
  %s3 = inlined_call_operand.vmem [shape: f32[1,128], index: 3, kind: input, shape index: {}]
  %s4 = inlined_call_operand.hbm [shape: f32[8,128], index: 4, kind: output, shape index: {}]
  %s5 = sld [smem:[#allocation0]]
  $region34: #{tpu_custom_call.1} parent=0
    _
  %s7 = ssub.s32 1, %s5
  %s8 = scalar_select 0, %s7, %s5
  $region1: #{tpu_custom_call.1} parent=0
    #allocation2 [shape = 'u8[2048]{0}', space=vmem, size = 0x800, scoped, tag = 'input window, operand 0, single buffered']
    #allocation3 [shape = 's32[1]{0}', space=sflag, size = 0x4, scoped, tag = 'scoped memory for tpu_custom_call.1']
    #allocation4 [shape = 's32[1]{0}', space=sflag, size = 0x4, scoped, tag = 'scoped memory for tpu_custom_call.1']
    #allocation5 [shape = 'u8[32768]{0}', space=vmem, size = 0x8000, scoped, tag = 'input window, operand 1, single buffered']
    #allocation6 [shape = 's32[1]{0}', space=sflag, size = 0x4, scoped, tag = 'scoped memory for tpu_custom_call.1']
    #allocation7 [shape = 'u8[4096]{0}', space=vmem, size = 0x1000, scoped, tag = 'output window, operand 0, single buffered']
    %9 = vsyncpa [#allocation3], 0
    %10 = vsyncpa [#allocation6], 0
    %11 = vsyncpa [#allocation4], 0
    // Predicated region
    $region2: #{tpu_custom_call.1} parent=1 // pred_check
      _
    $region3: #{tpu_custom_call.1} parent=1 // pred_check_branch
      %13 = sbr.rel (0) target = $region5
    $region4: #{tpu_custom_call.1} parent=1 // pred_region
      %15 = vsyncadd [#allocation3], 0
      %s17 = sshll.u32 %s0, 4
      %s18 = int_to_ptr.hbm [resolvable:$true] %s17
      %s19 = sshll.u32 [#allocation2], 4
      %s20 = int_to_ptr.vmem [resolvable:$true] %s19
      %22 = dma.hbm_to_vmem [thread:$0]  %s18, 64, %s20, [#allocation3]
    $region5: #{tpu_custom_call.1} parent=1 // pred_fallthru
      _
    // Predicated region
    $region6: #{tpu_custom_call.1} parent=1 // pred_check
      _
    $region7: #{tpu_custom_call.1} parent=1 // pred_check_branch
      %24 = sbr.rel (0) target = $region9
    $region8: #{tpu_custom_call.1} parent=1 // pred_region
      %26 = vsyncadd [#allocation6], 0
      %s27 = sshll.u32 %s1, 4
      %s28 = int_to_ptr.hbm [resolvable:$true] %s27
      %s29 = sshll.u32 [#allocation5], 4
      %s30 = int_to_ptr.vmem [resolvable:$true] %s29
      %35 = dma.hbm_to_vmem [thread:$0]  %s28, 1024, %s30, [#allocation6], 64, 64, 4
    $region9: #{tpu_custom_call.1} parent=1 // pred_fallthru
      _
    // Predicated region
    $region10: #{tpu_custom_call.1} parent=1 // pred_check
      _
    $region11: #{tpu_custom_call.1} parent=1 // pred_check_branch
      %37 = sbr.rel (0) target = $region13
    $region12: #{tpu_custom_call.1} parent=1 // pred_region
      _
    $region13: #{tpu_custom_call.1} parent=1 // pred_fallthru
      _
    // Predicated region
    $region14: #{tpu_custom_call.1} parent=1 // pred_check
      _
    $region15: #{tpu_custom_call.1} parent=1 // pred_check_branch
      %39 = sbr.rel (0) target = $region17
    $region16: #{tpu_custom_call.1} parent=1 // pred_region
      _
    $region17: #{tpu_custom_call.1} parent=1 // pred_fallthru
      _
    // Predicated region
    $region18: #{tpu_custom_call.1} parent=1 // pred_check
      _
    $region19: #{tpu_custom_call.1} parent=1 // pred_check_branch
      %41 = sbr.rel (0) target = $region21
    $region20: #{tpu_custom_call.1} parent=1 // pred_region
      %43 = dma.done [#allocation3], 64
    $region21: #{tpu_custom_call.1} parent=1 // pred_fallthru
      _
    // Predicated region
    $region22: #{tpu_custom_call.1} parent=1 // pred_check
      _
    $region23: #{tpu_custom_call.1} parent=1 // pred_check_branch
      %45 = sbr.rel (0) target = $region25
    $region24: #{tpu_custom_call.1} parent=1 // pred_region
      %47 = dma.done [#allocation6], 1024
    $region25: #{tpu_custom_call.1} parent=1 // pred_fallthru
      _
    %v48 = vld [vmem:[#allocation2] sm:$0xf]
    %v49 = vld [vmem:[#allocation5] sm:$0xf]
    %v50 = vld [vmem:[#allocation5 + $0x4] sm:$0xf]
    %v51 = vld [vmem:[#allocation5 + $0x8] sm:$0xf]
    %v52 = vld [vmem:[#allocation5 + $0xc] sm:$0xf]
    %v53 = vld [vmem:[#allocation5 + $0x10] sm:$0xf]
    %v54 = vld [vmem:[#allocation5 + $0x14] sm:$0xf]
    %v55 = vld [vmem:[#allocation5 + $0x18] sm:$0xf]
    %v56 = vld [vmem:[#allocation5 + $0x1c] sm:$0xf]
    %v57 = vld [vmem:[#allocation5 + $0x20] sm:$0xf]
    %v58 = vld [vmem:[#allocation5 + $0x24] sm:$0xf]
    %v59 = vld [vmem:[#allocation5 + $0x28] sm:$0xf]
    %v60 = vld [vmem:[#allocation5 + $0x2c] sm:$0xf]
    %v61 = vld [vmem:[#allocation5 + $0x30] sm:$0xf]
    %v62 = vld [vmem:[#allocation5 + $0x34] sm:$0xf]
    %v63 = vld [vmem:[#allocation5 + $0x38] sm:$0xf]
    %v64 = vld [vmem:[#allocation5 + $0x3c] sm:$0xf]
    %v81 = vunpack.c.l.b16 %v49
    %v82 = vunpack.c.l.b16 %v50
    %v83 = vunpack.c.l.b16 %v51
    %v84 = vunpack.c.l.b16 %v52
    %v85 = vunpack.c.l.b16 %v53
    %v86 = vunpack.c.l.b16 %v54
    %v87 = vunpack.c.l.b16 %v55
    %v88 = vunpack.c.l.b16 %v56
    %v89 = vunpack.c.l.b16 %v57
    %v90 = vunpack.c.l.b16 %v58
    %v91 = vunpack.c.l.b16 %v59
    %v92 = vunpack.c.l.b16 %v60
    %v93 = vunpack.c.l.b16 %v61
    %v94 = vunpack.c.l.b16 %v62
    %v95 = vunpack.c.l.b16 %v63
    %v96 = vunpack.c.l.b16 %v64
    %v97 = vpack.c.b16 %v82, %v81
    %v98 = vpack.c.b16 %v84, %v83
    %v99 = vpack.c.b16 %v86, %v85
    %v100 = vpack.c.b16 %v88, %v87
    %v101 = vpack.c.b16 %v90, %v89
    %v102 = vpack.c.b16 %v92, %v91
    %v103 = vpack.c.b16 %v94, %v93
    %v104 = vpack.c.b16 %v96, %v95
    %113 = vmatpush.bf16.msra.mxu0 %v104
    %114 = vmatpush.bf16.msra.mxu0 %v103
    %115 = vmatpush.bf16.msra.mxu0 %v102
    %116 = vmatpush.bf16.msra.mxu0 %v101
    %117 = vmatpush.bf16.msra.mxu0 %v100
    %118 = vmatpush.bf16.msra.mxu0 %v99
    %119 = vmatpush.bf16.msra.mxu0 %v98
    %120 = vmatpush.bf16.msra.mxu0 %v97
    %121 = vmatmul.bf16.gmra.mxu0 %v48
    %v122 = vpop.f32.mrf.mxu0
    %v123 = vadd.f32 0.0, %v122
    %v124 = vpop.f32.mrf.mxu0
    %125 = vdwg.mxu0
    %v126 = vld [vmem:[%s2] sm:$0x1]
    %v128 = vperm.slane %v126, 0
    %v130 = vmul.f32 %v123, %v128
    %v131 = vld [vmem:[%s3] sm:$0x1]
    %v133 = vperm.slane %v131, 0
    %v135 = vadd.f32 %v130, %v133
    %v136 = vmax.f32 %v135, 0.0
    %137 = vst [vmem:[#allocation7] sm:$0xff] %v136
    // Predicated region
    $region26: #{tpu_custom_call.1} parent=1 // pred_check
      _
    $region27: #{tpu_custom_call.1} parent=1 // pred_check_branch
      %139 = sbr.rel (0) target = $region29
    $region28: #{tpu_custom_call.1} parent=1 // pred_region
      %141 = vsyncadd [#allocation4], 0
      %s143 = sshll.u32 [#allocation7], 4
      %s144 = int_to_ptr.vmem [resolvable:$true] %s143
      %s145 = sshll.u32 %s4, 4
      %s146 = int_to_ptr.hbm [resolvable:$true] %s145
      %148 = dma.vmem_to_hbm [thread:$0]  %s144, 128, %s146, [#allocation4]
    $region29: #{tpu_custom_call.1} parent=1 // pred_fallthru
      _
    // Predicated region
    $region30: #{tpu_custom_call.1} parent=1 // pred_check
      _
    $region31: #{tpu_custom_call.1} parent=1 // pred_check_branch
      %150 = sbr.rel (0) target = $region33
    $region32: #{tpu_custom_call.1} parent=1 // pred_region
      %152 = dma.done [#allocation4], 128
    $region33: #{tpu_custom_call.1} parent=1 // pred_fallthru
      _
    %153 = vsyncpa [#allocation3], 1
    %154 = vsyncpa [#allocation6], 1
    %155 = vsyncpa [#allocation4], 1

</llo_original>
